<compile_context>
chip_gen: v7x
topology: tpu7x:2x2x1
jax: 0.10.0
libtpu: 0.0.40
codegen_flags: <defaults>
</compile_context>

<pallas_src>
import functools
import math

import jax
import jax.numpy as jnp
from jax import lax
from jax.experimental import pallas as pl
from jax.experimental.pallas import tpu as pltpu


# ---------------------------------------------------------------------------
# helpers
# ---------------------------------------------------------------------------

_BLOCK_ROWS = 512          # large row tile (perf review: 256-512)
_BLOCK_COLS = 1536         # N-tile for very wide non-LN dense layers (v7x VMEM)


def _round_up(x, m):
    return ((x + m - 1) // m) * m


@functools.lru_cache(maxsize=1)
def _vmem_limit_bytes():
    # Per-generation budget: ~3/4 of physical VMEM, capped at 100 MiB.
    # v5e/v6e (128 MiB) -> 96 MiB, v7x (64 MiB) -> 48 MiB.
    try:
        cap = int(pltpu.get_tpu_info().vmem_capacity_bytes)
    except Exception:
        cap = 64 * 1024 * 1024
    return max(32 * 1024 * 1024, min((cap * 3) // 4, 100 * 1024 * 1024))


def _compiler_params(dims):
    return pltpu.CompilerParams(dimension_semantics=dims,
                                vmem_limit_bytes=_vmem_limit_bytes())


def _pad_rows(a, rows):
    m = a.shape[0]
    if m == rows:
        return a
    pad = [(0, rows - m)] + [(0, 0)] * (a.ndim - 1)
    return jnp.pad(a, pad)


def _pick_bm(M, block_rows):
    """Row tile that avoids host-side padding whenever possible."""
    if M <= block_rows:
        return M, M                      # single full-M block, no pad
    t = block_rows - block_rows % 8
    while t >= 8:
        if M % t == 0:
            return t, M                  # exact divisor, no pad
        t -= 8
    return block_rows, _round_up(M, block_rows)   # rare fallback: pad


def _pick_tn(N, block_cols, allow):
    if not allow or N <= block_cols or N % 128 != 0:
        return N
    t = block_cols - block_cols % 128
    while t >= 128:
        if N % t == 0:
            return t
        t -= 128
    return N


def _pick_tq(S, target):
    if S <= target:
        return S
    t = target - target % 8
    while t >= 8:
        if S % t == 0:
            return t
        t -= 8
    return S


def _gelu(y):
    # TODO(synk): original KEMCE uses exact erf-gelu; tanh approximation used
    # here to stay on well-supported VPU/EUP ops.
    return 0.5 * y * (1.0 + jnp.tanh(0.7978845608028654 * (y + 0.044715 * y * y * y)))


# ---------------------------------------------------------------------------
# fused dense (+ optional second input, residual, activation, LayerNorm)
# ---------------------------------------------------------------------------

def _make_dense_kernel(has_x2, has_res, has_ln, act, eps):
    """kernel(x, w, [x2, w2], b, [res], [ln_g, ln_b], out)."""

    def kernel(*refs):
        it = iter(refs)
        x_ref = next(it)
        w_ref = next(it)
        y = jnp.dot(x_ref[...].astype(jnp.bfloat16), w_ref[...],
                    preferred_element_type=jnp.float32)
        if has_x2:
            x2_ref = next(it)
            w2_ref = next(it)
            y = y + jnp.dot(x2_ref[...].astype(jnp.bfloat16), w2_ref[...],
                            preferred_element_type=jnp.float32)
        b_ref = next(it)
        y = y + b_ref[...]
        if act == "gelu":
            y = _gelu(y)
        elif act == "tanh":
            y = jnp.tanh(y)
        if has_res:
            res_ref = next(it)
            y = y + res_ref[...].astype(jnp.float32)
        if has_ln:
            g_ref = next(it)
            beta_ref = next(it)
            mu = jnp.mean(y, axis=-1, keepdims=True)
            var = jnp.mean(jnp.square(y - mu), axis=-1, keepdims=True)
            y = (y - mu) * lax.rsqrt(var + eps) * g_ref[...] + beta_ref[...]
        o_ref = next(it)
        o_ref[...] = y.astype(o_ref.dtype)

    return kernel


def fused_dense(x, w, b, *, x2=None, w2=None, residual=None, act=None,
                ln_g=None, ln_b=None, eps=1e-12, out_dtype=jnp.float32,
                block_rows=_BLOCK_ROWS, block_cols=_BLOCK_COLS):
    """out = [LN]( act(x @ w [+ x2 @ w2] + b) [+ residual] ), row(/col)-tiled."""
    if act is not None and residual is not None:
        # correctness guard: kernel applies `act` before the residual add,
        # which is not the standard residual-block ordering.
        raise ValueError("fused_dense: act together with residual is unsupported")

    M, K = x.shape
    N = w.shape[1]
    has_ln = ln_g is not None
    bm, Mp = _pick_bm(M, block_rows)
    tn = _pick_tn(N, block_cols, allow=not has_ln)

    tiled_n = tn != N
    if tiled_n:
        grid = (Mp // bm, N // tn)
        dims = ("parallel", "parallel")
        ix_row = lambda i, j: (i, 0)      # noqa: E731
        ix_col = lambda i, j: (0, j)      # noqa: E731
        ix_out = lambda i, j: (i, j)      # noqa: E731
    else:
        grid = (Mp // bm,)
        dims = ("parallel",)
        ix_row = lambda i: (i, 0)         # noqa: E731
        ix_col = lambda i: (0, 0)         # noqa: E731
        ix_out = lambda i: (i, 0)         # noqa: E731

    inputs = [_pad_rows(x, Mp), w]
    in_specs = [pl.BlockSpec((bm, K), ix_row),
                pl.BlockSpec((K, tn), ix_col)]
    # TODO(synk): at real BERT sizes additionally single-buffer the constant
    # weight/bias/LN blocks (pipeline_mode=pl.Buffered(1)) to save VMEM on v7x.
    if x2 is not None:
        K2 = x2.shape[1]
        inputs += [_pad_rows(x2, Mp), w2]
        in_specs += [pl.BlockSpec((bm, K2), ix_row),
                     pl.BlockSpec((K2, tn), ix_col)]
    inputs.append(b.reshape(1, N))
    in_specs.append(pl.BlockSpec((1, tn), ix_col))
    if residual is not None:
        inputs.append(_pad_rows(residual, Mp))
        in_specs.append(pl.BlockSpec((bm, tn), ix_out))
    if has_ln:
        inputs += [ln_g.reshape(1, N), ln_b.reshape(1, N)]
        in_specs += [pl.BlockSpec((1, N), ix_col),
                     pl.BlockSpec((1, N), ix_col)]

    kernel = _make_dense_kernel(x2 is not None, residual is not None,
                                has_ln, act, eps)
    out = pl.pallas_call(
        kernel,
        out_shape=jax.ShapeDtypeStruct((Mp, N), out_dtype),
        grid=grid,
        in_specs=in_specs,
        out_specs=pl.BlockSpec((bm, tn), ix_out),
        compiler_params=_compiler_params(dims),
    )(*inputs)
    return out[:M] if Mp != M else out


# ---------------------------------------------------------------------------
# standalone layernorm (used once, for the embeddings)
# ---------------------------------------------------------------------------

def _layernorm_kernel(x_ref, g_ref, b_ref, o_ref, *, eps):
    x = x_ref[...].astype(jnp.float32)
    mu = jnp.mean(x, axis=-1, keepdims=True)
    var = jnp.mean(jnp.square(x - mu), axis=-1, keepdims=True)
    o_ref[...] = ((x - mu) * lax.rsqrt(var + eps) * g_ref[...] + b_ref[...]
                  ).astype(o_ref.dtype)


def layernorm(x, g, b, eps=1e-12, block_rows=_BLOCK_ROWS):
    M, H = x.shape
    bm, Mp = _pick_bm(M, block_rows)
    out = pl.pallas_call(
        functools.partial(_layernorm_kernel, eps=eps),
        out_shape=jax.ShapeDtypeStruct((Mp, H), jnp.float32),
        grid=(Mp // bm,),
        in_specs=[pl.BlockSpec((bm, H), lambda i: (i, 0)),
                  pl.BlockSpec((1, H), lambda i: (0, 0)),
                  pl.BlockSpec((1, H), lambda i: (0, 0))],
        out_specs=pl.BlockSpec((bm, H), lambda i: (i, 0)),
        compiler_params=_compiler_params(("parallel",)),
    )(_pad_rows(x, Mp), g.reshape(1, H), b.reshape(1, H))
    return out[:M] if Mp != M else out


# ---------------------------------------------------------------------------
# multi-head self attention
#   grid = (batch, query-tile); heads processed in 128-lane groups and stored
#   directly into the output slab (no full-width concatenate, no host-side
#   split_heads / merge transposes).
# ---------------------------------------------------------------------------

def _attention_kernel(*refs, num_heads, head_dim, scale, heads_per_group,
                      col_split):
    H = num_heads * head_dim
    if col_split:
        q_ref, k_ref, v_ref, m_ref, o_ref = refs
        q = q_ref[0]                 # (tq, H)  lane-aligned slab
        k = k_ref[0]                 # (S,  H)
        v = v_ref[0]                 # (S,  H)
    else:
        qq_ref, kv_ref, m_ref, o_ref = refs
        q = qq_ref[0][:, :H]         # toy sizes: slice inside the kernel
        k = kv_ref[0][:, H:2 * H]
        v = kv_ref[0][:, 2 * H:3 * H]
    mask = m_ref[0]                  # (1, S) additive mask, f32

    for g0 in range(0, num_heads, heads_per_group):
        g1 = min(g0 + heads_per_group, num_heads)
        outs = []
        for h in range(g0, g1):
            lo = h * head_dim
            hi = lo + head_dim
            # contract dim 1 of both operands (no explicit transpose)
            s = lax.dot_general(q[:, lo:hi].astype(jnp.bfloat16),
                                k[:, lo:hi].astype(jnp.bfloat16),
                                (((1,), (1,)), ((), ())),
                                preferred_element_type=jnp.float32)
            s = s * scale + mask
            s = s - jnp.max(s, axis=-1, keepdims=True)
            p = jnp.exp(s)
            p = p * pl.reciprocal(jnp.sum(p, axis=-1, keepdims=True), approx=True)
            outs.append(jnp.dot(p.astype(jnp.bfloat16),
                                v[:, lo:hi].astype(jnp.bfloat16),
                                preferred_element_type=jnp.float32))
        blk = outs[0] if len(outs) == 1 else jnp.concatenate(outs, axis=-1)
        # direct per-group store (group width is 128-lane aligned when
        # head_dim divides 128), only one group of heads live at a time
        o_ref[0, :, g0 * head_dim:g1 * head_dim] = blk.astype(o_ref.dtype)


def attention(qkv, mask, num_heads, head_dim, *, tq_target=256):
    B, S, threeH = qkv.shape
    H = num_heads * head_dim
    assert threeH == 3 * H
    scale = 1.0 / math.sqrt(head_dim)
    tq = _pick_tq(S, tq_target)
    nq = S // tq
    col_split = (H % 128 == 0)            # lane-aligned Q/K/V slabs
    if head_dim < 128 and 128 % head_dim == 0:
        hpg = min(num_heads, 128 // head_dim)
    else:
        hpg = 1

    if col_split:
        in_specs = [
            pl.BlockSpec((1, tq, H), lambda b, qi: (b, qi, 0)),   # Q slab
            pl.BlockSpec((1, S, H), lambda b, qi: (b, 0, 1)),     # K slab
            pl.BlockSpec((1, S, H), lambda b, qi: (b, 0, 2)),     # V slab
            pl.BlockSpec((1, 1, S), lambda b, qi: (b, 0, 0)),     # mask
        ]
        inputs = (qkv, qkv, qkv, mask)
    else:
        in_specs = [
            pl.BlockSpec((1, tq, threeH), lambda b, qi: (b, qi, 0)),
            pl.BlockSpec((1, S, threeH), lambda b, qi: (b, 0, 0)),
            pl.BlockSpec((1, 1, S), lambda b, qi: (b, 0, 0)),
        ]
        inputs = (qkv, qkv, mask)

    return pl.pallas_call(
        functools.partial(_attention_kernel, num_heads=num_heads,
                          head_dim=head_dim, scale=scale,
                          heads_per_group=hpg, col_split=col_split),
        out_shape=jax.ShapeDtypeStruct((B, S, H), jnp.bfloat16),
        grid=(B, nq),
        in_specs=in_specs,
        out_specs=pl.BlockSpec((1, tq, H), lambda b, qi: (b, qi, 0)),
        compiler_params=_compiler_params(("parallel", "parallel")),
    )(*inputs)


# ---------------------------------------------------------------------------
# fused pooler + classifier head (one tiny kernel; not a perf lever)
# ---------------------------------------------------------------------------

def _head_kernel(x_ref, pw_ref, pb_ref, cw_ref, cb_ref, o_ref):
    pooled = jnp.tanh(jnp.dot(x_ref[...].astype(jnp.bfloat16), pw_ref[...],
                              preferred_element_type=jnp.float32) + pb_ref[...])
    o_ref[...] = jnp.dot(pooled.astype(jnp.bfloat16), cw_ref[...],
                         preferred_element_type=jnp.float32) + cb_ref[...]


def classifier_head(x0, pool_w, pool_b, cls_w, cls_b):
    B, H = x0.shape
    L = cls_w.shape[1]
    return pl.pallas_call(
        _head_kernel,
        out_shape=jax.ShapeDtypeStruct((B, L), jnp.float32),
        grid=(1,),
        in_specs=[pl.BlockSpec((B, H), lambda i: (0, 0)),
                  pl.BlockSpec((H, H), lambda i: (0, 0)),
                  pl.BlockSpec((1, H), lambda i: (0, 0)),
                  pl.BlockSpec((H, L), lambda i: (0, 0)),
                  pl.BlockSpec((1, L), lambda i: (0, 0))],
        out_specs=pl.BlockSpec((B, L), lambda i: (0, 0)),
    )(x0, pool_w, pool_b.reshape(1, H), cls_w, cls_b.reshape(1, L))


def cross_entropy(logits, labels):
    # tiny (B, num_labels) reduction: kept in plain XLA per perf review
    logp = jax.nn.log_softmax(logits.astype(jnp.float32), axis=-1)
    return -jnp.mean(jnp.take_along_axis(logp, labels[:, None], axis=1))


# ---------------------------------------------------------------------------
# Parameters (deterministic synthetic init, std = 0.02 like init_bert_weights)
# Matmul weights stored in bf16 (MXU path + halved HBM bytes); biases/LN f32.
# ---------------------------------------------------------------------------

def init_params(key, cfg):
    H, I, E = cfg["hidden_size"], cfg["intermediate_size"], cfg["entity_size"]
    V, P, T = cfg["vocab_size"], cfg["max_position"], cfg["type_vocab_size"]
    L = cfg["num_labels"]
    std = 0.02
    keys = iter(jax.random.split(key, 64))

    def w(shape, dtype=jnp.bfloat16):
        return (jax.random.normal(next(keys), shape, jnp.float32) * std).astype(dtype)

    def zeros(n):
        return jnp.zeros((n,), jnp.float32)

    params = {
        "word_emb": w((V, H), jnp.float32),
        "pos_emb": w((P, H), jnp.float32),
        "type_emb": w((T, H), jnp.float32),
        "emb_ln_g": jnp.ones((H,), jnp.float32),
        "emb_ln_b": zeros(H),
        "pool_w": w((H, H)),
        "pool_b": zeros(H),
        "cls_w": w((H, L)),
        "cls_b": zeros(L),
        "layers": [],
    }
    for _ in range(cfg["num_layers"]):
        params["layers"].append({
            "wqkv": w((H, 3 * H)), "bqkv": zeros(3 * H),   # fused Q|K|V
            "wo": w((H, H)), "bo": zeros(H),
            "ln1_g": jnp.ones((H,), jnp.float32), "ln1_b": zeros(H),
            "wi_x": w((H, I)), "wi_e": w((E, I)), "bi": zeros(I),
            "w_out": w((I, H)), "b_out": zeros(H),
            "ln2_g": jnp.ones((H,), jnp.float32), "ln2_b": zeros(H),
        })
    return params


# ---------------------------------------------------------------------------
# Forward pass (matches KemceBinaryPrediction.forward)
# ---------------------------------------------------------------------------

def kemce_forward(params, cfg, input_ids, token_type_ids=None, input_ent=None,
                  ent_mask=None, attention_mask=None, labels=None):
    B, S = input_ids.shape
    H = cfg["hidden_size"]
    nH = cfg["num_heads"]
    d = H // nH

    if token_type_ids is None:
        token_type_ids = jnp.zeros_like(input_ids)
    if attention_mask is None:
        attention_mask = jnp.ones((B, S), jnp.float32)

    # --- BERT embeddings (gathers are glue; LayerNorm is a Pallas kernel) ---
    emb = (jnp.take(params["word_emb"], input_ids, axis=0)
           + params["pos_emb"][None, :S, :]
           + jnp.take(params["type_emb"], token_type_ids, axis=0))
    h = layernorm(emb.reshape(B * S, H), params["emb_ln_g"], params["emb_ln_b"])

    # additive attention mask, one row per batch item -> (B, 1, S)
    ext_mask = (1.0 - attention_mask.astype(jnp.float32))[:, None, :] * -10000.0

    # masked entity embeddings, bf16 once (re-read every layer as x2)
    ent = (input_ent * ent_mask[..., None].astype(jnp.float32)
           ).reshape(B * S, -1).astype(jnp.bfloat16)

    for lyr in params["layers"]:
        # fused Q|K|V projection -> bf16 (consumed only by bf16 MXU dots)
        qkv = fused_dense(h, lyr["wqkv"], lyr["bqkv"],
                          out_dtype=jnp.bfloat16)                 # [B*S, 3H]
        # lane-dense attention, query-tiled grid, heads split inside
        ctx = attention(qkv.reshape(B, S, 3 * H), ext_mask, nH, d)  # [B,S,H] bf16
        ctx = ctx.reshape(B * S, H)
        # output projection + residual + LayerNorm fused (f32 out for residual)
        attn_out = fused_dense(ctx, lyr["wo"], lyr["bo"], residual=h,
                               ln_g=lyr["ln1_g"], ln_b=lyr["ln1_b"])
        # knowledge (entity) fused intermediate: gelu(x @ Wi_x + ent @ Wi_e + b)
        inter = fused_dense(attn_out, lyr["wi_x"], lyr["bi"],
                            x2=ent, w2=lyr["wi_e"], act="gelu",
                            out_dtype=jnp.bfloat16)
        # output dense + residual + LayerNorm fused
        h = fused_dense(inter, lyr["w_out"], lyr["b_out"], residual=attn_out,
                        ln_g=lyr["ln2_g"], ln_b=lyr["ln2_b"])

    # --- pooler (tanh of first-token projection) + classifier, one kernel ---
    first_tok = h.reshape(B, S, H)[:, 0, :]
    prediction_scores = classifier_head(first_tok, params["pool_w"],
                                        params["pool_b"], params["cls_w"],
                                        params["cls_b"])

    if labels is not None:
        return cross_entropy(prediction_scores, labels)
    return prediction_scores


# ---------------------------------------------------------------------------
# Main
# ---------------------------------------------------------------------------

if __name__ == "__main__":
    # --- self-test 1: N-tiled (2-D grid) dense path (full-BERT-size path) ---
    kx, kw = jax.random.split(jax.random.PRNGKey(1))
    xt = jax.random.normal(kx, (16, 32), jnp.float32)
    wt = (jax.random.normal(kw, (32, 256), jnp.float32) * 0.1).astype(jnp.bfloat16)
    bt = jnp.zeros((256,), jnp.float32)
    yt = fused_dense(xt, wt, bt, block_cols=128)
    rt = jnp.dot(xt.astype(jnp.bfloat16).astype(jnp.float32),
                 wt.astype(jnp.float32)) + bt
    jax.block_until_ready(yt)
    assert yt.shape == (16, 256)
    assert float(jnp.max(jnp.abs(yt - rt))) < 1e-2

    # --- self-test 2: lane-aligned (col-split) attention path, H=128 -------
    nh_t, d_t, S_t = 2, 64, 8
    Ht = nh_t * d_t
    qkv_t = (jax.random.normal(jax.random.PRNGKey(2), (1, S_t, 3 * Ht),
                               jnp.float32) * 0.5).astype(jnp.bfloat16)
    mask_t = jnp.zeros((1, 1, S_t), jnp.float32)
    at = attention(qkv_t, mask_t, nh_t, d_t)
    qf = qkv_t[..., :Ht].astype(jnp.float32).reshape(1, S_t, nh_t, d_t).transpose(0, 2, 1, 3)
    kf = qkv_t[..., Ht:2 * Ht].astype(jnp.float32).reshape(1, S_t, nh_t, d_t).transpose(0, 2, 1, 3)
    vf = qkv_t[..., 2 * Ht:].astype(jnp.float32).reshape(1, S_t, nh_t, d_t).transpose(0, 2, 1, 3)
    sf = jnp.einsum("bhqd,bhkd->bhqk", qf, kf) / math.sqrt(d_t)
    pf = jax.nn.softmax(sf, axis=-1)
    rf = jnp.einsum("bhqk,bhkd->bhqd", pf, vf).transpose(0, 2, 1, 3).reshape(1, S_t, Ht)
    jax.block_until_ready(at)
    assert float(jnp.max(jnp.abs(at.astype(jnp.float32) - rf))) < 0.05

    # --- full model, toy config --------------------------------------------
    cfg = dict(
        hidden_size=32,
        num_heads=4,
        intermediate_size=64,
        entity_size=32,
        num_layers=2,
        vocab_size=50,
        max_position=32,
        type_vocab_size=2,
        num_labels=2,
    )

    B, S = 2, 8
    root = jax.random.PRNGKey(0)
    k_param, k_ids, k_type, k_ent, k_emask, k_lab = jax.random.split(root, 6)

    params = init_params(k_param, cfg)

    input_ids = jax.random.randint(k_ids, (B, S), 0, cfg["vocab_size"], dtype=jnp.int32)
    token_type_ids = jax.random.randint(k_type, (B, S), 0, cfg["type_vocab_size"],
                                        dtype=jnp.int32)
    input_ent = jax.random.normal(k_ent, (B, S, cfg["entity_size"]), jnp.float32)
    ent_mask = (jax.random.uniform(k_emask, (B, S)) > 0.5).astype(jnp.float32)
    attention_mask = jnp.ones((B, S), jnp.float32).at[1, 6:].set(0.0)
    labels = jax.random.randint(k_lab, (B,), 0, cfg["num_labels"], dtype=jnp.int32)

    # inference path (labels=None -> prediction scores)
    scores = kemce_forward(params, cfg, input_ids, token_type_ids, input_ent,
                           ent_mask, attention_mask, labels=None)
    jax.block_until_ready(scores)
    assert scores.shape == (B, cfg["num_labels"])
    assert bool(jnp.all(jnp.isfinite(scores)))

    # training path (labels given -> scalar cross-entropy loss)
    loss = kemce_forward(params, cfg, input_ids, token_type_ids, input_ent,
                         ent_mask, attention_mask, labels=labels)
    jax.block_until_ready(loss)
    assert loss.shape == () and bool(jnp.isfinite(loss))

    print("KERNEL_OK")
</pallas_src>

<mosaic_0001>
module attributes {stable_mosaic.version = 11 : i64} {
  func.func @kernel(%arg0: i32, %arg1: i32, %arg2: memref<16x32xf32, #tpu.memory_space<vmem>>, %arg3: memref<32x128xbf16, #tpu.memory_space<vmem>>, %arg4: memref<1x128xf32, #tpu.memory_space<vmem>>, %arg5: memref<16x128xf32, #tpu.memory_space<vmem>>) attributes {dimension_semantics = [#tpu.dimension_semantics<parallel>, #tpu.dimension_semantics<parallel>], iteration_bounds = array<i64: 1, 2>, scalar_prefetch = 0 : i64, scratch_operands = 0 : i64, tpu.core_type = #tpu.core_type<tc>, window_params = [{transform_indices = @transform_0, window_bounds = array<i64: 16, 32>}, {transform_indices = @transform_1, window_bounds = array<i64: 32, 128>}, {transform_indices = @transform_2, window_bounds = array<i64: 1, 128>}, {transform_indices = @transform_3, window_bounds = array<i64: 16, 128>}]} {
    %c0 = arith.constant 0 : index
    %c0_0 = arith.constant 0 : index
    %0 = vector.load %arg2[%c0, %c0_0] : memref<16x32xf32, #tpu.memory_space<vmem>>, vector<16x32xf32>
    %1 = arith.truncf %0 : vector<16x32xf32> to vector<16x32xbf16>
    %c0_1 = arith.constant 0 : index
    %c0_2 = arith.constant 0 : index
    %2 = vector.load %arg3[%c0_1, %c0_2] : memref<32x128xbf16, #tpu.memory_space<vmem>>, vector<32x128xbf16>
    %cst = arith.constant dense<0.000000e+00> : vector<16x128xf32>
    %3 = tpu.matmul %1, %2, %cst {dimension_numbers = #tpu.dot_dimension_numbers<[1], [0], [0], [1], [0, 0, 1, 1], [], []>} : vector<16x32xbf16>, vector<32x128xbf16>, vector<16x128xf32> -> vector<16x128xf32>
    %c0_3 = arith.constant 0 : index
    %c0_4 = arith.constant 0 : index
    %4 = vector.load %arg4[%c0_3, %c0_4] : memref<1x128xf32, #tpu.memory_space<vmem>>, vector<1x128xf32>
    %5 = vector.broadcast %4 : vector<1x128xf32> to vector<16x128xf32>
    %6 = arith.addf %3, %5 : vector<16x128xf32>
    %c0_5 = arith.constant 0 : index
    %c0_6 = arith.constant 0 : index
    %7 = vector.load %arg5[%c0_5, %c0_6] : memref<16x128xf32, #tpu.memory_space<vmem>>, vector<16x128xf32>
    tpu.vector_store %arg5[%c0_5, %c0_6], %6 {strides = array<i32>} : memref<16x128xf32, #tpu.memory_space<vmem>>, vector<16x128xf32>,
    return
  }
  func.func @transform_0(%arg0: i32, %arg1: i32) -> (i32, i32) {
    %c0_i32 = arith.constant 0 : i32
    %c0_i32_0 = arith.constant 0 : i32
    return %arg0, %c0_i32 : i32, i32
  }
  func.func @transform_1(%arg0: i32, %arg1: i32) -> (i32, i32) {
    %c0_i32 = arith.constant 0 : i32
    %c0_i32_0 = arith.constant 0 : i32
    return %c0_i32, %arg1 : i32, i32
  }
  func.func @transform_2(%arg0: i32, %arg1: i32) -> (i32, i32) {
    %c0_i32 = arith.constant 0 : i32
    %c0_i32_0 = arith.constant 0 : i32
    return %c0_i32, %arg1 : i32, i32
  }
  func.func @transform_3(%arg0: i32, %arg1: i32) -> (i32, i32) {
    %c0_i32 = arith.constant 0 : i32
    return %arg0, %arg1 : i32, i32
  }
}

</mosaic_0001>

<llo_original>
// kernel: tpu_custom_call.1
$region0: #{tpu_custom_call.1}
  #allocation0 [shape = 'u32[]', space=smem, size = 0x4, offset = 0x4, fixed_abs, tag = 'smem constant byte address 0x4 - core index']
  #allocation1 [shape = 'u32[144,128]{1,0:T(1,128)}', space=vmem, size = 0x12000, scoped, tag = 'internal scratch']
  %s0 = inlined_call_operand.hbm [shape: f32[16,32], index: 0, kind: input, shape index: {}]
  %s1 = inlined_call_operand.hbm [shape: bf16[32,256], index: 1, kind: input, shape index: {}]
  %s2 = inlined_call_operand.vmem [shape: f32[1,256], index: 2, kind: input, shape index: {}]
  %s3 = inlined_call_operand.hbm [shape: f32[16,256], index: 3, kind: output, shape index: {}]
  %s4 = sld [smem:[#allocation0]]
  $region53: #{tpu_custom_call.1} parent=0
    _
  %s6 = ssub.s32 1, %s4
  %s7 = scalar_select 0, %s6, %s4
  $region1: #{tpu_custom_call.1} parent=0
    #allocation2 [shape = 'u8[8192]{0}', space=vmem, size = 0x2000, scoped, tag = 'input window, operand 0, single buffered']
    #allocation3 [shape = 's32[2]{0}', space=sflag, size = 0x8, scoped, tag = 'scoped memory for tpu_custom_call.1']
    #allocation4 [shape = 's32[2]{0}', space=sflag, size = 0x8, scoped, tag = 'scoped memory for tpu_custom_call.1']
    #allocation5 [shape = 'u8[16384]{0}', space=vmem, size = 0x4000, scoped, tag = 'input window, operand 1']
    #allocation6 [shape = 's32[2]{0}', space=sflag, size = 0x8, scoped, tag = 'scoped memory for tpu_custom_call.1']
    #allocation7 [shape = 'u8[16384]{0}', space=vmem, size = 0x4000, scoped, tag = 'output window, operand 0']
    %8 = vsyncpa [#allocation3], 0
    %9 = vsyncpa [#allocation6], 0
    %s10 = scalar_lea.sflag [#allocation6], 1
    %11 = vsyncpa %s10, 0
    %12 = vsyncpa [#allocation4], 0
    %s13 = scalar_lea.sflag [#allocation4], 1
    %14 = vsyncpa %s13, 0
    loop: start=0, step=1, limit=4
    $region2: #{tpu_custom_call.1} parent=1 // loop_pre_header
      _
    $region3: #{tpu_custom_call.1} parent=1 // loop_header
      %s16 = sphi 0, %s20
      %p17 = scmp.ge.s32.totalorder %s16, 4
      %s23 = sphi 0, %s35
      %s24 = sphi 0, %s31
      %s25 = sphi 0, %s23
      %s26 = sphi 0, %s24
      %s27 = sphi 0, %s25
      %s28 = sphi 0, %s26
      %s38 = sphi 0, %s40
      %s41 = sphi 0, %s38
      %s42 = sphi 0, %s41
      %s58 = sphi 0, %s42
      %s64 = sphi 0, %s66
      %s67 = sphi 0, %s64
      %s68 = sphi 0, %s67
      %s84 = sphi 0, %s68
      %s90 = sphi 0, %s92
      %s93 = sphi 0, %s90
      %s94 = sphi 0, %s93
      %s110 = sphi 0, %s94
      %s118 = sphi 0, %s120
      %s121 = sphi 0, %s118
      %s122 = sphi 0, %s121
      %s138 = sphi 0, %s122
    $region4: #{tpu_custom_call.1} parent=1 // loop_header_branch
      %19 = sbr.rel (%p17) target = $region8
    $region5: #{tpu_custom_call.1} parent=1 // loop_body
      %s21 = ssub.s32 %s16, 1
      %s22 = ssub.s32 %s16, 2
      %s29 = sadd.s32 1, %s24
      %p30 = scmp.ge.s32.totalorder %s29, 2
      %s31 = scalar_select %p30, 0, %s29
      %s32 = sadd.s32 1, %s23
      %s33 = scalar_select %p30, %s32, %s23
      %p34 = scmp.ge.s32.totalorder %s33, 1
      %s35 = scalar_select %p34, 0, %s33
      %s36 = ssub.s32 %s23, %s35
      %p37 = scmp.eq.s32.totalorder %s36, 0
      %s39 = sadd.s32 %s38, 1
      %s40 = scalar_select %p37, %s38, %s39
      %p43 = pneg %p37
      %p44 = scmp.eq.s32.totalorder %s16, 1
      %p45 = por %p43, %p44
      %p46 = scmp.ne.s32.totalorder %s38, %s41
      %p47 = scmp.eq.s32.totalorder %s16, 0
      %p48 = por %p46, %p47
      %p49 = scmp.ne.s32.totalorder %s38, %s41
      %p50 = scmp.eq.s32.totalorder %s21, 1
      %p51 = por %p49, %p50
      %p52 = scmp.ne.s32.totalorder %s41, %s42
      %p53 = scmp.eq.s32.totalorder %s21, 0
      %p54 = por %p52, %p53
      %p55 = scmp.ne.s32.totalorder %s41, %s42
      %p56 = scmp.eq.s32.totalorder %s22, 1
      %p57 = por %p55, %p56
      %p59 = scmp.ne.s32.totalorder %s42, %s58
      %p60 = scmp.eq.s32.totalorder %s22, 0
      %p61 = por %p59, %p60
      %s62 = ssub.s32 %s24, %s31
      %p63 = scmp.eq.s32.totalorder %s62, 0
      %s65 = sadd.s32 %s64, 1
      %s66 = scalar_select %p63, %s64, %s65
      %p69 = pneg %p63
      %p70 = scmp.eq.s32.totalorder %s16, 1
      %p71 = por %p69, %p70
      %p72 = scmp.ne.s32.totalorder %s64, %s67
      %p73 = scmp.eq.s32.totalorder %s16, 0
      %p74 = por %p72, %p73
      %p75 = scmp.ne.s32.totalorder %s64, %s67
      %p76 = scmp.eq.s32.totalorder %s21, 1
      %p77 = por %p75, %p76
      %p78 = scmp.ne.s32.totalorder %s67, %s68
      %p79 = scmp.eq.s32.totalorder %s21, 0
      %p80 = por %p78, %p79
      %p81 = scmp.ne.s32.totalorder %s67, %s68
      %p82 = scmp.eq.s32.totalorder %s22, 1
      %p83 = por %p81, %p82
      %p85 = scmp.ne.s32.totalorder %s68, %s84
      %p86 = scmp.eq.s32.totalorder %s22, 0
      %p87 = por %p85, %p86
      %s88 = ssub.s32 %s24, %s31
      %p89 = scmp.eq.s32.totalorder %s88, 0
      %s91 = sadd.s32 %s90, 1
      %s92 = scalar_select %p89, %s90, %s91
      %p95 = pneg %p89
      %p96 = scmp.eq.s32.totalorder %s16, 1
      %p97 = por %p95, %p96
      %p98 = scmp.ne.s32.totalorder %s90, %s93
      %p99 = scmp.eq.s32.totalorder %s16, 0
      %p100 = por %p98, %p99
      %p101 = scmp.ne.s32.totalorder %s90, %s93
      %p102 = scmp.eq.s32.totalorder %s21, 1
      %p103 = por %p101, %p102
      %p104 = scmp.ne.s32.totalorder %s93, %s94
      %p105 = scmp.eq.s32.totalorder %s21, 0
      %p106 = por %p104, %p105
      %p107 = scmp.ne.s32.totalorder %s93, %s94
      %p108 = scmp.eq.s32.totalorder %s22, 1
      %p109 = por %p107, %p108
      %p111 = scmp.ne.s32.totalorder %s94, %s110
      %p112 = scmp.eq.s32.totalorder %s22, 0
      %p113 = por %p111, %p112
      %s114 = ssub.s32 %s23, %s35
      %s115 = ssub.s32 %s24, %s31
      %s116 = sor.u32 %s114, %s115
      %p117 = scmp.eq.s32.totalorder %s116, 0
      %s119 = sadd.s32 %s118, 1
      %s120 = scalar_select %p117, %s118, %s119
      %p123 = pneg %p117
      %p124 = scmp.eq.s32.totalorder %s16, 1
      %p125 = por %p123, %p124
      %p126 = scmp.ne.s32.totalorder %s118, %s121
      %p127 = scmp.eq.s32.totalorder %s16, 0
      %p128 = por %p126, %p127
      %p129 = scmp.ne.s32.totalorder %s118, %s121
      %p130 = scmp.eq.s32.totalorder %s21, 1
      %p131 = por %p129, %p130
      %p132 = scmp.ne.s32.totalorder %s121, %s122
      %p133 = scmp.eq.s32.totalorder %s21, 0
      %p134 = por %p132, %p133
      %p135 = scmp.ne.s32.totalorder %s121, %s122
      %p136 = scmp.eq.s32.totalorder %s22, 1
      %p137 = por %p135, %p136
      %p139 = scmp.ne.s32.totalorder %s122, %s138
      %p140 = scmp.eq.s32.totalorder %s22, 0
      %p141 = por %p139, %p140
      %p142 = scmp.le.s32.totalorder 1, %s16
      %p143 = scmp.lt.s32.totalorder %s16, 3
      %p144 = pnand %p142, %p143
      %p145 = pneg %p144
      // Predicated region
      $region9: #{tpu_custom_call.1} parent=5 // pred_check
        _
      $region10: #{tpu_custom_call.1} parent=5 // pred_check_branch
        %147 = sbr.rel (%p144) target = $region12
      $region11: #{tpu_custom_call.1} parent=5 // pred_region
        %s148 = ssub.s32 %s16, 1
        // Predicated region
        $region13: #{tpu_custom_call.1} parent=11 // pred_check
          %p149 = pneg %p54
        $region14: #{tpu_custom_call.1} parent=11 // pred_check_branch
          %151 = sbr.rel (%p149) target = $region16
        $region15: #{tpu_custom_call.1} parent=11 // pred_region
          %s152 = smul.u32 2, %s25
          %s154 = ssub.s32 256, 256
          %155 = vsyncadd [#allocation3], %s154
          %s156 = smul.addr %s152, 128
          %s157 = scalar_lea.hbm %s0, %s156
          %s158 = sshll.u32 [#allocation2], 4
          %s159 = int_to_ptr.vmem [resolvable:$true] %s158
          %164 = dma.hbm_to_vmem [thread:$0]  %s157, 256, %s159, [#allocation3], 128, 128, 8
        $region16: #{tpu_custom_call.1} parent=11 // pred_fallthru
          _
      $region12: #{tpu_custom_call.1} parent=5 // pred_fallthru
        _
      %p165 = scmp.lt.s32.totalorder %s16, 2
      // Predicated region
      $region17: #{tpu_custom_call.1} parent=5 // pred_check
        %p166 = pneg %p165
      $region18: #{tpu_custom_call.1} parent=5 // pred_check_branch
        %168 = sbr.rel (%p166) target = $region20
      $region19: #{tpu_custom_call.1} parent=5 // pred_region
        // Predicated region
        $region21: #{tpu_custom_call.1} parent=19 // pred_check
          %p169 = pneg %p74
        $region22: #{tpu_custom_call.1} parent=19 // pred_check_branch
          %171 = sbr.rel (%p169) target = $region24
        $region23: #{tpu_custom_call.1} parent=19 // pred_region
          %s172 = sand.u32 %s64, 1
          %s173 = scalar_lea.sflag [#allocation6], %s172
          %s174 = sand.u32 %s64, 1
          %s175 = smul.addr %s174, 16
          %s176 = scalar_lea.vmem [#allocation5], %s175
          %s178 = ssub.s32 256, 256
          %179 = vsyncadd %s173, %s178
          %s180 = smul.addr %s24, 64
          %s181 = scalar_lea.hbm %s1, %s180
          %s182 = sshll.u32 %s176, 4
          %s183 = int_to_ptr.vmem [resolvable:$true] %s182
          %188 = dma.hbm_to_vmem [thread:$0]  %s181, 256, %s183, %s173, 128, 64, 4
        $region24: #{tpu_custom_call.1} parent=19 // pred_fallthru
          _
        // Predicated region
        $region25: #{tpu_custom_call.1} parent=19 // pred_check
          %p189 = pneg %p100
        $region26: #{tpu_custom_call.1} parent=19 // pred_check_branch
          %191 = sbr.rel (%p189) target = $region28
        $region27: #{tpu_custom_call.1} parent=19 // pred_region
          %p192 = scmp.lt.s32.totalorder %s24, 1
          %s193 = scalar_select %p192, %s24, 1
          %s194 = scalar_lea.vmem %s2, %s193
        $region28: #{tpu_custom_call.1} parent=19 // pred_fallthru
          _
      $region20: #{tpu_custom_call.1} parent=5 // pred_fallthru
        _
      %p195 = scmp.le.s32.totalorder 1, %s16
      %p196 = scmp.lt.s32.totalorder %s16, 3
      %p197 = pnand %p195, %p196
      %p198 = pneg %p197
      // Predicated region
      $region29: #{tpu_custom_call.1} parent=5 // pred_check
        _
      $region30: #{tpu_custom_call.1} parent=5 // pred_check_branch
        %200 = sbr.rel (%p197) target = $region32
      $region31: #{tpu_custom_call.1} parent=5 // pred_region
        %s201 = ssub.s32 %s16, 1
        // Predicated region
        $region33: #{tpu_custom_call.1} parent=31 // pred_check
          %p202 = pneg %p54
        $region34: #{tpu_custom_call.1} parent=31 // pred_check_branch
          %204 = sbr.rel (%p202) target = $region36
        $region35: #{tpu_custom_call.1} parent=31 // pred_region
          %205 = dma.done [#allocation3], 256
        $region36: #{tpu_custom_call.1} parent=31 // pred_fallthru
          _
        %s206 = sand.u32 %s67, 1
        %s207 = scalar_lea.sflag [#allocation6], %s206
        %s208 = sand.u32 %s67, 1
        %s209 = smul.addr %s208, 16
        %s210 = scalar_lea.vmem [#allocation5], %s209
        // Predicated region
        $region37: #{tpu_custom_call.1} parent=31 // pred_check
          %p211 = pneg %p80
        $region38: #{tpu_custom_call.1} parent=31 // pred_check_branch
          %213 = sbr.rel (%p211) target = $region40
        $region39: #{tpu_custom_call.1} parent=31 // pred_region
          %214 = dma.done %s207, 256
        $region40: #{tpu_custom_call.1} parent=31 // pred_fallthru
          _
        %p215 = pneg %p54
        %p216 = pneg %p51
        %s217 = sand.u32 %s67, 1
        %s218 = scalar_lea.sflag [#allocation6], %s217
        %s219 = sand.u32 %s67, 1
        %s220 = smul.addr %s219, 16
        %s221 = scalar_lea.vmem [#allocation5], %s220
        %p222 = pneg %p80
        %p223 = pneg %p77
        %p224 = scmp.lt.s32.totalorder %s26, 1
        %s225 = scalar_select %p224, %s26, 1
        %s226 = scalar_lea.vmem %s2, %s225
        %p227 = pneg %p106
        %p228 = pneg %p103
        %p229 = pneg %p134
        %p230 = pneg %p131
        %s231 = sand.u32 %s121, 1
        %s232 = scalar_lea.sflag [#allocation4], %s231
        %s233 = sand.u32 %s121, 1
        %s234 = smul.addr %s233, 16
        %s235 = scalar_lea.vmem [#allocation7], %s234
        %s236 = smul.u32 2, %s25
        %p237 = scmp.lt.s32.totalorder %s26, 1
        %s238 = scalar_select %p237, %s26, 1
        %s239 = scalar_lea.vmem %s2, %s238
        %s240 = smul.u32 2, %s25
        %v242 = vld [vmem:[#allocation2] sm:$0xff]
        %v243 = vld [vmem:[#allocation2 + $0x8] sm:$0xff]
        %v244 = vpack.c.bf16 %v243, %v242
        %v245 = vld [vmem:[%s210] sm:$0xf]
        %v246 = vld [vmem:[%s210 + $0x4] sm:$0xf]
        %v247 = vld [vmem:[%s210 + $0x8] sm:$0xf]
        %v248 = vld [vmem:[%s210 + $0xc] sm:$0xf]
        %v249 = vld [vmem:[%s239] sm:$0x1]
        %v251 = vlaneseq
        %v252 = vshrl.u32 %v251, 7
        %v253 = vsub.s32 0, %v252
        %v254 = vrot.slane %v249, %v253
        %v260 = vunpack.c.l.b16 %v245
        %v261 = vunpack.c.l.b16 %v246
        %v262 = vunpack.c.l.b16 %v247
        %v263 = vunpack.c.l.b16 %v248
        %v264 = vpack.c.b16 %v261, %v260
        %v265 = vpack.c.b16 %v263, %v262
        %vm268 = vcmask 261120
        %v270 = vsel %vm268, %v244, 0
        %272 = vmatprep.subr.bf16.mxu0 0
        %273 = vmatpush1.bf16.msra.mxu0 %v264
        %274 = vmatprep.subr.bf16.mxu0 0
        %275 = vmatpush1.bf16.msra.mxu0 %v265
        %276 = vmatprep.subr.bf16.mxu0 0
        %277 = vmatpush1.bf16.msra.mxu0 0
        %278 = vmatprep.subr.bf16.mxu0 0
        %279 = vmatpush1.bf16.msra.mxu0 0
        %280 = vmatprep.subr.bf16.mxu0 0
        %281 = vmatpush1.bf16.msra.mxu0 0
        %282 = vmatprep.subr.bf16.mxu0 0
        %283 = vmatpush1.bf16.msra.mxu0 0
        %284 = vmatprep.subr.bf16.mxu0 0
        %285 = vmatpush1.bf16.msra.mxu0 0
        %286 = vmatprep.subr.bf16.mxu0 0
        %287 = vmatpush1.bf16.msra.mxu0 0
        %288 = vmatprep.subr.bf16.mxu0 0
        %289 = vmatpush1.bf16.msra.mxu0 0
        %290 = vmatprep.subr.bf16.mxu0 0
        %291 = vmatpush1.bf16.msra.mxu0 0
        %292 = vmatprep.subr.bf16.mxu0 0
        %293 = vmatpush1.bf16.msra.mxu0 0
        %294 = vmatprep.subr.bf16.mxu0 0
        %295 = vmatpush1.bf16.msra.mxu0 0
        %296 = vmatprep.subr.bf16.mxu0 0
        %297 = vmatpush1.bf16.msra.mxu0 0
        %298 = vmatprep.subr.bf16.mxu0 0
        %299 = vmatpush1.bf16.msra.mxu0 0
        %300 = vmatprep.subr.bf16.mxu0 0
        %301 = vmatpush1.bf16.msra.mxu0 0
        %302 = vmatprep.subr.bf16.mxu0 0
        %303 = vmatpush1.bf16.msra.mxu0 0
        %304 = vmatprep.mubr.bf16.mxu0 0
        %305 = vmatmul.mubr.bf16.gmra.mrb[0].mxu0 %v270
        %v306 = vpop.f32.mrb[0].mxu0
        %v307 = vadd.f32 %v254, %v306
        %v308 = vpop.f32.mrb[0].mxu0
        %v309 = vpop.f32.mrb[0].mxu0
        %v310 = vadd.f32 %v254, %v309
        %v311 = vpop.f32.mrb[0].mxu0
        %312 = vdwg.mxu0
        %313 = vst [vmem:[%s235] sm:$0xff] %v307
        %314 = vst [vmem:[%s235 + $0x8] sm:$0xff] %v310
        %s315 = sand.u32 %s121, 1
        %s316 = scalar_lea.sflag [#allocation4], %s315
        %s317 = sand.u32 %s121, 1
        %s318 = smul.addr %s317, 16
        %s319 = scalar_lea.vmem [#allocation7], %s318
        // Predicated region
        $region41: #{tpu_custom_call.1} parent=31 // pred_check
          %p320 = pneg %p131
        $region42: #{tpu_custom_call.1} parent=31 // pred_check_branch
          %322 = sbr.rel (%p320) target = $region44
        $region43: #{tpu_custom_call.1} parent=31 // pred_region
          %s323 = smul.u32 2, %s25
          %s325 = ssub.s32 256, 256
          %326 = vsyncadd %s316, %s325
          %s327 = smul.addr %s323, 2
          %s328 = sadd.s32 %s26, %s327
          %s329 = smul.addr %s328, 128
          %s330 = scalar_lea.hbm %s3, %s329
          %s331 = sshll.u32 %s319, 4
          %s332 = int_to_ptr.vmem [resolvable:$true] %s331
          %337 = dma.vmem_to_hbm [thread:$0]  %s332, 256, %s330, %s316, 128, 256, 8
        $region44: #{tpu_custom_call.1} parent=31 // pred_fallthru
          _
      $region32: #{tpu_custom_call.1} parent=5 // pred_fallthru
        _
      %p338 = scmp.le.s32.totalorder 2, %s16
      // Predicated region
      $region45: #{tpu_custom_call.1} parent=5 // pred_check
        %p339 = pneg %p338
      $region46: #{tpu_custom_call.1} parent=5 // pred_check_branch
        %341 = sbr.rel (%p339) target = $region48
      $region47: #{tpu_custom_call.1} parent=5 // pred_region
        %s342 = ssub.s32 %s16, 2
        // Predicated region
        $region49: #{tpu_custom_call.1} parent=47 // pred_check
          %p343 = pneg %p137
        $region50: #{tpu_custom_call.1} parent=47 // pred_check_branch
          %345 = sbr.rel (%p343) target = $region52
        $region51: #{tpu_custom_call.1} parent=47 // pred_region
          %s346 = sand.u32 %s122, 1
          %s347 = scalar_lea.sflag [#allocation4], %s346
          %s348 = sand.u32 %s122, 1
          %s349 = smul.addr %s348, 16
          %s350 = scalar_lea.vmem [#allocation7], %s349
          %351 = dma.done %s347, 256
        $region52: #{tpu_custom_call.1} parent=47 // pred_fallthru
          _
      $region48: #{tpu_custom_call.1} parent=5 // pred_fallthru
        _
    $region6: #{tpu_custom_call.1} parent=1 // loop_footer
      %s20 = sadd.s32 1, %s16
    $region7: #{tpu_custom_call.1} parent=1 // loop_footer_branch
      %15 = sbr.rel target = $region3
    $region8: #{tpu_custom_call.1} parent=1 // loop_exit
      _
    %352 = vsyncpa [#allocation3], 1
    %s353 = scalar_lea.sflag [#allocation3], 1
    %354 = vsyncpa %s353, 1
    %355 = vsyncpa [#allocation6], 1
    %s356 = scalar_lea.sflag [#allocation6], 1
    %357 = vsyncpa %s356, 1
    %358 = vsyncpa [#allocation4], 1
    %s359 = scalar_lea.sflag [#allocation4], 1
    %360 = vsyncpa %s359, 1

</llo_original>
